<compile_context>
chip_gen: v7x
topology: tpu7x:2x2x1
jax: 0.10.0
libtpu: 0.0.40
codegen_flags: <defaults>
</compile_context>

<pallas_src>
import jax
import jax.numpy as jnp
from jax import lax
from jax.experimental import pallas as pl
from jax.experimental.pallas import tpu as pltpu


# Double-buffered working set at default tiles (tm=512, tk=1024) is only ~5 MiB;
# 32 MiB allows sweeping up to tm=1024 / tk=2048 (~14 MiB with a 3-deep A buffer)
# while leaving compiler-internal scratch headroom even on v7x's 64 MiB VMEM.
_VMEM_LIMIT_BYTES = 32 * 1024 * 1024


def _round_up(x, m):
    return (x + m - 1) // m * m


# ----------------------------- Pallas kernels -------------------------------

def mlp_kernel(feat_ref, w1_ref, b1_ref, w2_ref, b2_ref, out_ref):
    """temp = normalize(MLP_1(leaky_relu(MLP(features)))); weights [in,out], bf16.

    Padded feature ROWS produce bias-derived garbage here; correctness relies on the
    out[:num_item] slice in run_mlp before the concat — do not drop that slice.
    Padded output COLUMNS stay exactly 0 (w2/b2 padded cols are 0), so the row norm
    over d_pad equals the norm over dim_latent.
    """
    h = jnp.dot(feat_ref[...], w1_ref[...],
                preferred_element_type=jnp.float32) + b1_ref[...]
    h = jnp.maximum(h, 0.01 * h)                       # F.leaky_relu default slope (f32 VPU)
    t = jnp.dot(h.astype(jnp.bfloat16), w2_ref[...],
                preferred_element_type=jnp.float32) + b2_ref[...]
    # F.normalize: x / max(||x||, 1e-12)  ==  x * rsqrt(max(||x||^2, 1e-24))
    inv = lax.rsqrt(jnp.maximum(jnp.sum(t * t, axis=1, keepdims=True), 1e-24))
    out_ref[...] = (t * inv).astype(jnp.bfloat16)


def gcn_pass1_kernel(a_ref, xn_ref, h_ref, acc_ref):
    """h[i_tile] = sum_k A[i_tile,k_tile] @ xn[k_tile];  xn pre-normalized bf16."""
    k = pl.program_id(1)

    @pl.when(k == 0)
    def _():
        acc_ref[...] = jnp.zeros_like(acc_ref)

    acc_ref[...] += jnp.dot(a_ref[...], xn_ref[...],
                            preferred_element_type=jnp.float32)

    @pl.when(k == pl.num_programs(1) - 1)
    def _():
        h_ref[...] = acc_ref[...].astype(h_ref.dtype)   # emit bf16 directly


def gcn_pass2_kernel(a_ref, hb_ref, xn_ref, hi_ref, o_ref, acc_ref):
    """out[i_tile] = sum_k A[i_tile,k_tile] @ h[k_tile] + xn[i_tile] + h[i_tile]."""
    k = pl.program_id(1)

    @pl.when(k == 0)
    def _():
        acc_ref[...] = jnp.zeros_like(acc_ref)

    acc_ref[...] += jnp.dot(a_ref[...], hb_ref[...],
                            preferred_element_type=jnp.float32)

    @pl.when(k == pl.num_programs(1) - 1)
    def _():
        o_ref[...] = (acc_ref[...]
                      + xn_ref[...].astype(jnp.float32)
                      + hi_ref[...].astype(jnp.float32))


# ------------------------------ pallas wrappers ------------------------------

def run_mlp(features, w1_bf, b1, w2_bf, b2, *, tm=512):
    """Row-tiled MLP producing L2-normalized bf16 rows. Weights stay VMEM-resident."""
    n_item, d_feat = features.shape
    d_hid = w1_bf.shape[1]
    d_out = w2_bf.shape[1]
    tm = min(tm, _round_up(n_item, 8))
    n_pad = _round_up(n_item, tm)
    feats = jnp.pad(features, ((0, n_pad - n_item), (0, 0))).astype(jnp.bfloat16)

    out = pl.pallas_call(
        mlp_kernel,
        out_shape=jax.ShapeDtypeStruct((n_pad, d_out), jnp.bfloat16),
        grid_spec=pltpu.PrefetchScalarGridSpec(
            num_scalar_prefetch=0,
            grid=(n_pad // tm,),
            in_specs=[
                pl.BlockSpec((tm, d_feat), lambda i: (i, 0)),
                pl.BlockSpec((d_feat, d_hid), lambda i: (0, 0)),   # weight resident
                pl.BlockSpec((1, d_hid), lambda i: (0, 0)),
                pl.BlockSpec((d_hid, d_out), lambda i: (0, 0)),    # weight resident
                pl.BlockSpec((1, d_out), lambda i: (0, 0)),
            ],
            out_specs=pl.BlockSpec((tm, d_out), lambda i: (i, 0)),
        ),
        compiler_params=pltpu.CompilerParams(
            dimension_semantics=("parallel",),
            vmem_limit_bytes=_VMEM_LIMIT_BYTES),
    )(feats, w1_bf, b1, w2_bf, b2)
    # Padded rows hold bias-derived garbage -> MUST slice before the concat.
    return out[:n_item]


def _gcn_grid_call(kernel, out_dtype, a_bf, contract_op, i_ops, tm, tk):
    """Shared (i, k) tiled driver: A[i,k] @ B[k] reductions with optional per-i adds."""
    n_pad = a_bf.shape[0]
    d = contract_op.shape[1]
    grid = (n_pad // tm, n_pad // tk)

    in_specs = [
        # A is the dominant HBM stream; 3-deep buffering hides the i-boundary bubble.
        pl.BlockSpec((tm, tk), lambda i, k: (i, k), pipeline_mode=pl.Buffered(3)),
        pl.BlockSpec((tk, d), lambda i, k: (k, 0)),                 # bf16 contraction op
    ]
    in_specs += [pl.BlockSpec((tm, d), lambda i, k: (i, 0))] * len(i_ops)

    return pl.pallas_call(
        kernel,
        out_shape=jax.ShapeDtypeStruct((n_pad, d), out_dtype),
        grid_spec=pltpu.PrefetchScalarGridSpec(
            num_scalar_prefetch=0,
            grid=grid,
            in_specs=in_specs,
            out_specs=pl.BlockSpec((tm, d), lambda i, k: (i, 0)),
            scratch_shapes=[pltpu.VMEM((tm, d), jnp.float32)],
        ),
        compiler_params=pltpu.CompilerParams(
            dimension_semantics=("parallel", "arbitrary"),
            vmem_limit_bytes=_VMEM_LIMIT_BYTES),
    )(a_bf, contract_op, *i_ops)


def run_gcn_pass1(a_bf, xn_pad, *, tm, tk):
    return _gcn_grid_call(gcn_pass1_kernel, jnp.bfloat16, a_bf, xn_pad, (), tm, tk)


def run_gcn_pass2(a_bf, h_bf, xn_pad, *, tm, tk):
    return _gcn_grid_call(gcn_pass2_kernel, jnp.float32, a_bf, h_bf,
                          (xn_pad, h_bf), tm, tk)


# ------------------------------- glue (JAX) ---------------------------------

def build_norm_adj(edge_index, num_nodes, n_pad=None, dtype=jnp.float32):
    """Dense D^-1/2 A D^-1/2 (self loops removed), built directly at padded size/dtype."""
    if n_pad is None:
        n_pad = num_nodes
    row, col = edge_index[0], edge_index[1]
    keep = row != col                                    # remove_self_loops
    row = jnp.where(keep, row, 0)
    col = jnp.where(keep, col, 0)
    w = keep.astype(jnp.float32)
    deg = jnp.zeros((num_nodes,), jnp.float32).at[row].add(w)
    dinv = jnp.where(deg > 0, deg ** -0.5, 0.0)
    norm = dinv[row] * dinv[col] * w
    # messages from source (row) aggregated at target (col): A[col, row] += norm.
    # Scatter straight into the padded target dtype so only ONE [n_pad, n_pad]
    # array ever materializes (no f32 + padded-copy + cast chain).
    return jnp.zeros((n_pad, n_pad), dtype).at[col, row].add(norm.astype(dtype))


def gcn_forward(edge_index_drop, edge_index, features, params, *,
                tm=512, tk=1024, tm_mlp=512):
    """Mirrors GCN.forward; returns (x_hat, preference). edge_index_drop unused (as in torch)."""
    del edge_index_drop
    num_user = params["preference"].shape[0]
    num_item = features.shape[0]
    n = num_user + num_item
    d_lat = params["w2t"].shape[1]
    # Exactly 128 lanes: lane-dense stores, exactly fills v5e's 128-wide MXU columns.
    d_pad = _round_up(max(d_lat, 128), 128)

    # Zero-pad MLP output dim + preference to d_pad (padded columns stay exactly 0).
    w2t_p = jnp.pad(params["w2t"], ((0, 0), (0, d_pad - d_lat)))
    b2_p = jnp.pad(params["b2"], ((0, 0), (0, d_pad - d_lat)))

    # normalize(MLP path) as bf16 [num_item, d_pad]
    temp_n = run_mlp(features,
                     params["w1t"].astype(jnp.bfloat16), params["b1"],
                     w2t_p.astype(jnp.bfloat16), b2_p, tm=tm_mlp)

    # normalize(preference) — tiny, done by XLA in f32 then cast.
    pref_p = jnp.pad(params["preference"], ((0, 0), (0, d_pad - d_lat)))
    inv = lax.rsqrt(jnp.maximum(jnp.sum(pref_p * pref_p, axis=1, keepdims=True), 1e-24))
    pref_n = (pref_p * inv).astype(jnp.bfloat16)

    xn = jnp.concatenate([pref_n, temp_n], axis=0)       # [n, d_pad] bf16, L2-normalized

    # Tile selection: keep tiles nested (one divides the other) so node padding is
    # max(tm, tk) rather than lcm — padding in A grows quadratically.
    limit = _round_up(n, 128)
    tm_eff = min(tm, limit)
    tk_eff = min(tk, limit)
    if tk_eff % tm_eff != 0 and tm_eff % tk_eff != 0:
        tk_eff = tm_eff
    n_pad = _round_up(n, max(tm_eff, tk_eff))
    # Keep >=2 row tiles so the "parallel" i axis still splits across both v7x TCs.
    if n_pad // tm_eff < 2 and (n_pad // 2) % 128 == 0:
        tm_eff = n_pad // 2

    xn_pad = jnp.pad(xn, ((0, n_pad - n), (0, 0)))        # padded rows all-zero

    # One bf16 [n_pad, n_pad] normalized adjacency (padded rows/cols all-zero).
    a_bf = build_norm_adj(edge_index, n, n_pad=n_pad, dtype=jnp.bfloat16)

    h = run_gcn_pass1(a_bf, xn_pad, tm=tm_eff, tk=tk_eff)        # bf16: h = A @ xn
    out = run_gcn_pass2(a_bf, h, xn_pad, tm=tm_eff, tk=tk_eff)   # f32: A@h + xn + h

    x_hat = out[:n, :d_lat]
    return x_hat, params["preference"]


# ------------------------------ reference (JAX) ------------------------------

def gcn_forward_ref(edge_index, features, params):
    h = features @ params["w1t"] + params["b1"]
    h = jnp.where(h > 0, h, 0.01 * h)
    temp = h @ params["w2t"] + params["b2"]
    x = jnp.concatenate([params["preference"], temp], axis=0)
    x = x / jnp.maximum(jnp.linalg.norm(x, axis=1, keepdims=True), 1e-12)
    a = build_norm_adj(edge_index, x.shape[0])
    h1 = a @ x
    h2 = a @ h1
    return h1 + x + h2


# ---------------------------------- main -------------------------------------

if __name__ == "__main__":
    # 'tiktok'-style config: dim_feat = 128, dim_latent = 32.  N = 256 nodes is small
    # but, with tm=tk=128 passed explicitly below, exercises a real (2, 2) grid with a
    # tiled k-reduction.  Production defaults are tm=512 / tk=1024.
    num_user, num_item = 64, 192
    dim_feat, dim_latent = 128, 32
    num_nodes = num_user + num_item

    key = jax.random.PRNGKey(0)
    k_pref, k_feat, k_w1, k_b1, k_w2, k_b2 = jax.random.split(key, 6)

    # preference: xavier_normal(gain=1) -> std = sqrt(2 / (fan_in + fan_out))
    pref_std = (2.0 / (num_user + dim_latent)) ** 0.5
    preference = pref_std * jax.random.normal(k_pref, (num_user, dim_latent), jnp.float32)

    # Linear layers (stored pre-transposed [in, out]); uniform init ~ torch default scale
    bnd1 = 1.0 / (dim_feat ** 0.5)
    w1t = jax.random.uniform(k_w1, (dim_feat, 4 * dim_latent), jnp.float32, -bnd1, bnd1)
    b1 = jax.random.uniform(k_b1, (1, 4 * dim_latent), jnp.float32, -bnd1, bnd1)
    bnd2 = 1.0 / ((4 * dim_latent) ** 0.5)
    w2t = jax.random.uniform(k_w2, (4 * dim_latent, dim_latent), jnp.float32, -bnd2, bnd2)
    b2 = jax.random.uniform(k_b2, (1, dim_latent), jnp.float32, -bnd2, bnd2)

    params = {"preference": preference, "w1t": w1t, "b1": b1, "w2t": w2t, "b2": b2}

    # item (raw multimodal) features
    features = jax.random.normal(k_feat, (num_item, dim_feat), jnp.float32)

    # bipartite user-item edges (item ids offset by num_user), both directions
    users = jnp.repeat(jnp.arange(num_user, dtype=jnp.int32), 3)
    items = num_user + jnp.arange(num_item, dtype=jnp.int32)
    src = jnp.concatenate([users, items])
    dst = jnp.concatenate([items, users])
    edge_index = jnp.stack([src, dst], axis=0)            # [2, 2*num_item]
    edge_index_drop = edge_index                           # dropout path unused in forward

    x_hat, pref_out = gcn_forward(edge_index_drop, edge_index, features, params,
                                  tm=128, tk=128, tm_mlp=128)
    x_hat = jax.block_until_ready(x_hat)

    # correctness check vs pure-f32 JAX reference (kernel uses bf16 A / xn / h operands,
    # so tolerance is loosened accordingly)
    ref = gcn_forward_ref(edge_index, features, params)
    assert x_hat.shape == (num_nodes, dim_latent)
    assert pref_out.shape == (num_user, dim_latent)
    assert jnp.allclose(x_hat, ref, atol=3e-2, rtol=3e-2), (
        f"max abs err {float(jnp.max(jnp.abs(x_hat - ref)))}")

    print("KERNEL_OK")
</pallas_src>

<mosaic_0001>
module attributes {stable_mosaic.version = 11 : i64} {
  func.func @mlp_kernel(%arg0: i32, %arg1: memref<128x128xbf16, #tpu.memory_space<vmem>>, %arg2: memref<128x128xbf16, #tpu.memory_space<vmem>>, %arg3: memref<1x128xf32, #tpu.memory_space<vmem>>, %arg4: memref<128x128xbf16, #tpu.memory_space<vmem>>, %arg5: memref<1x128xf32, #tpu.memory_space<vmem>>, %arg6: memref<128x128xbf16, #tpu.memory_space<vmem>>) attributes {dimension_semantics = [#tpu.dimension_semantics<parallel>], iteration_bounds = array<i64: 2>, scalar_prefetch = 0 : i64, scratch_operands = 0 : i64, tpu.core_type = #tpu.core_type<tc>, window_params = [{transform_indices = @transform_0, window_bounds = array<i64: 128, 128>}, {pipeline_mode = #tpu.pipeline_mode<synchronous>, transform_indices = @transform_1, window_bounds = array<i64: 128, 128>}, {pipeline_mode = #tpu.pipeline_mode<synchronous>, transform_indices = @transform_2, window_bounds = array<i64: 1, 128>}, {pipeline_mode = #tpu.pipeline_mode<synchronous>, transform_indices = @transform_3, window_bounds = array<i64: 128, 128>}, {pipeline_mode = #tpu.pipeline_mode<synchronous>, transform_indices = @transform_4, window_bounds = array<i64: 1, 128>}, {transform_indices = @transform_5, window_bounds = array<i64: 128, 128>}]} {
    %c0 = arith.constant 0 : index
    %c0_0 = arith.constant 0 : index
    %0 = vector.load %arg1[%c0, %c0_0] : memref<128x128xbf16, #tpu.memory_space<vmem>>, vector<128x128xbf16>
    %c0_1 = arith.constant 0 : index
    %c0_2 = arith.constant 0 : index
    %1 = vector.load %arg2[%c0_1, %c0_2] : memref<128x128xbf16, #tpu.memory_space<vmem>>, vector<128x128xbf16>
    %cst = arith.constant dense<0.000000e+00> : vector<128x128xf32>
    %2 = tpu.matmul %0, %1, %cst {dimension_numbers = #tpu.dot_dimension_numbers<[1], [0], [0], [1], [0, 0, 1, 1], [], []>} : vector<128x128xbf16>, vector<128x128xbf16>, vector<128x128xf32> -> vector<128x128xf32>
    %c0_3 = arith.constant 0 : index
    %c0_4 = arith.constant 0 : index
    %3 = vector.load %arg3[%c0_3, %c0_4] : memref<1x128xf32, #tpu.memory_space<vmem>>, vector<1x128xf32>
    %4 = vector.broadcast %3 : vector<1x128xf32> to vector<128x128xf32>
    %5 = arith.addf %2, %4 : vector<128x128xf32>
    %cst_5 = arith.constant 0.00999999977 : f32
    %6 = vector.broadcast %cst_5 : f32 to vector<128x128xf32>
    %7 = arith.mulf %6, %5 : vector<128x128xf32>
    %8 = arith.maximumf %5, %7 : vector<128x128xf32>
    %9 = arith.truncf %8 : vector<128x128xf32> to vector<128x128xbf16>
    %c0_6 = arith.constant 0 : index
    %c0_7 = arith.constant 0 : index
    %10 = vector.load %arg4[%c0_6, %c0_7] : memref<128x128xbf16, #tpu.memory_space<vmem>>, vector<128x128xbf16>
    %cst_8 = arith.constant dense<0.000000e+00> : vector<128x128xf32>
    %11 = tpu.matmul %9, %10, %cst_8 {dimension_numbers = #tpu.dot_dimension_numbers<[1], [0], [0], [1], [0, 0, 1, 1], [], []>} : vector<128x128xbf16>, vector<128x128xbf16>, vector<128x128xf32> -> vector<128x128xf32>
    %c0_9 = arith.constant 0 : index
    %c0_10 = arith.constant 0 : index
    %12 = vector.load %arg5[%c0_9, %c0_10] : memref<1x128xf32, #tpu.memory_space<vmem>>, vector<1x128xf32>
    %13 = vector.broadcast %12 : vector<1x128xf32> to vector<128x128xf32>
    %14 = arith.addf %11, %13 : vector<128x128xf32>
    %15 = arith.mulf %14, %14 : vector<128x128xf32>
    %cst_11 = arith.constant dense<0.000000e+00> : vector<128xf32>
    %16 = vector.multi_reduction <add>, %15, %cst_11 [1] : vector<128x128xf32> to vector<128xf32>
    %17 = vector.shape_cast %16 : vector<128xf32> to vector<128x1xf32>
    %cst_12 = arith.constant 1.000000e-24 : f32
    %18 = vector.broadcast %cst_12 : f32 to vector<128x1xf32>
    %19 = arith.maximumf %17, %18 : vector<128x1xf32>
    %20 = math.rsqrt %19 : vector<128x1xf32>
    %21 = vector.broadcast %20 : vector<128x1xf32> to vector<128x128xf32>
    %22 = arith.mulf %14, %21 : vector<128x128xf32>
    %23 = arith.truncf %22 : vector<128x128xf32> to vector<128x128xbf16>
    %c0_13 = arith.constant 0 : index
    %c0_14 = arith.constant 0 : index
    %24 = vector.load %arg6[%c0_13, %c0_14] : memref<128x128xbf16, #tpu.memory_space<vmem>>, vector<128x128xbf16>
    tpu.vector_store %arg6[%c0_13, %c0_14], %23 {strides = array<i32>} : memref<128x128xbf16, #tpu.memory_space<vmem>>, vector<128x128xbf16>,
    return
  }
  func.func @transform_0(%arg0: i32) -> (i32, i32) {
    %c0_i32 = arith.constant 0 : i32
    %c0_i32_0 = arith.constant 0 : i32
    return %arg0, %c0_i32 : i32, i32
  }
  func.func @transform_1(%arg0: i32) -> (i32, i32) {
    %c0_i32 = arith.constant 0 : i32
    %c0_i32_0 = arith.constant 0 : i32
    %c0_i32_1 = arith.constant 0 : i32
    return %c0_i32, %c0_i32_0 : i32, i32
  }
  func.func @transform_2(%arg0: i32) -> (i32, i32) {
    %c0_i32 = arith.constant 0 : i32
    %c0_i32_0 = arith.constant 0 : i32
    %c0_i32_1 = arith.constant 0 : i32
    return %c0_i32, %c0_i32_0 : i32, i32
  }
  func.func @transform_3(%arg0: i32) -> (i32, i32) {
    %c0_i32 = arith.constant 0 : i32
    %c0_i32_0 = arith.constant 0 : i32
    %c0_i32_1 = arith.constant 0 : i32
    return %c0_i32, %c0_i32_0 : i32, i32
  }
  func.func @transform_4(%arg0: i32) -> (i32, i32) {
    %c0_i32 = arith.constant 0 : i32
    %c0_i32_0 = arith.constant 0 : i32
    %c0_i32_1 = arith.constant 0 : i32
    return %c0_i32, %c0_i32_0 : i32, i32
  }
  func.func @transform_5(%arg0: i32) -> (i32, i32) {
    %c0_i32 = arith.constant 0 : i32
    %c0_i32_0 = arith.constant 0 : i32
    return %arg0, %c0_i32 : i32, i32
  }
}

</mosaic_0001>

<llo_original>
// kernel: tpu_custom_call.1
$region0: #{tpu_custom_call.1}
  #allocation0 [shape = 'u32[]', space=smem, size = 0x4, offset = 0x4, fixed_abs, tag = 'smem constant byte address 0x4 - core index']
  #allocation1 [shape = 'u32[144,128]{1,0:T(1,128)}', space=vmem, size = 0x12000, scoped, tag = 'internal scratch']
  %s0 = inlined_call_operand.hbm [shape: bf16[256,128], index: 0, kind: input, shape index: {}]
  %s1 = inlined_call_operand.hbm [shape: bf16[128,128], index: 1, kind: input, shape index: {}]
  %s2 = inlined_call_operand.vmem [shape: f32[1,128], index: 2, kind: input, shape index: {}]
  %s3 = inlined_call_operand.hbm [shape: bf16[128,128], index: 3, kind: input, shape index: {}]
  %s4 = inlined_call_operand.vmem [shape: f32[1,128], index: 4, kind: input, shape index: {}]
  %s5 = inlined_call_operand.hbm [shape: bf16[256,128], index: 5, kind: output, shape index: {}]
  %s6 = sld [smem:[#allocation0]]
  $region65: #{tpu_custom_call.1} parent=0
    _
  %s8 = ssub.s32 1, %s6
  %s9 = scalar_select 0, %s8, %s6
  $region1: #{tpu_custom_call.1} parent=0
    #allocation2 [shape = 'u8[65536]{0}', space=vmem, size = 0x10000, scoped, tag = 'input window, operand 0']
    #allocation3 [shape = 's32[2]{0}', space=sflag, size = 0x8, scoped, tag = 'scoped memory for tpu_custom_call.1']
    #allocation4 [shape = 's32[2]{0}', space=sflag, size = 0x8, scoped, tag = 'scoped memory for tpu_custom_call.1']
    #allocation5 [shape = 'u8[32768]{0}', space=vmem, size = 0x8000, scoped, tag = 'input window, operand 1, single buffered']
    #allocation6 [shape = 's32[1]{0}', space=sflag, size = 0x4, scoped, tag = 'scoped memory for tpu_custom_call.1']
    #allocation7 [shape = 'u8[32768]{0}', space=vmem, size = 0x8000, scoped, tag = 'input window, operand 3, single buffered']
    #allocation8 [shape = 'u8[65536]{0}', space=vmem, size = 0x10000, scoped, tag = 'output window, operand 0']
    %10 = vsyncpa [#allocation3], 0
    %s11 = scalar_lea.sflag [#allocation3], 1
    %12 = vsyncpa %s11, 0
    %13 = vsyncpa [#allocation6], 0
    %14 = vsyncpa [#allocation4], 0
    %s15 = scalar_lea.sflag [#allocation4], 1
    %16 = vsyncpa %s15, 0
    loop: start=0, step=1, limit=4
    $region2: #{tpu_custom_call.1} parent=1 // loop_pre_header
      _
    $region3: #{tpu_custom_call.1} parent=1 // loop_header
      %s18 = sphi 0, %s22
      %p19 = scmp.ge.s32.totalorder %s18, 4
      %s28 = sphi 0, %s30
      %s31 = sphi 0, %s28
      %s32 = sphi 0, %s31
      %s48 = sphi 0, %s32
      %s52 = sphi 0, %s52
      %s54 = sphi 0, %s52
      %s55 = sphi 0, %s54
      %s69 = sphi 0, %s55
      %s73 = sphi 0, %s73
      %s75 = sphi 0, %s73
      %s76 = sphi 0, %s75
      %s90 = sphi 0, %s76
      %s94 = sphi 0, %s94
      %s96 = sphi 0, %s94
      %s97 = sphi 0, %s96
      %s111 = sphi 0, %s97
      %s115 = sphi 0, %s115
      %s117 = sphi 0, %s115
      %s118 = sphi 0, %s117
      %s132 = sphi 0, %s118
      %s138 = sphi 0, %s140
      %s141 = sphi 0, %s138
      %s142 = sphi 0, %s141
      %s158 = sphi 0, %s142
    $region4: #{tpu_custom_call.1} parent=1 // loop_header_branch
      %21 = sbr.rel (%p19) target = $region8
    $region5: #{tpu_custom_call.1} parent=1 // loop_body
      %s23 = ssub.s32 %s18, 1
      %s24 = ssub.s32 %s18, 2
      %s25 = sadd.s32 %s18, 1
      %s26 = ssub.s32 %s18, %s25
      %p27 = scmp.eq.s32.totalorder %s26, 0
      %s29 = sadd.s32 %s28, 1
      %s30 = scalar_select %p27, %s28, %s29
      %p33 = pneg %p27
      %p34 = scmp.eq.s32.totalorder %s18, 1
      %p35 = por %p33, %p34
      %p36 = scmp.ne.s32.totalorder %s28, %s31
      %p37 = scmp.eq.s32.totalorder %s18, 0
      %p38 = por %p36, %p37
      %p39 = scmp.ne.s32.totalorder %s28, %s31
      %p40 = scmp.eq.s32.totalorder %s23, 1
      %p41 = por %p39, %p40
      %p42 = scmp.ne.s32.totalorder %s31, %s32
      %p43 = scmp.eq.s32.totalorder %s23, 0
      %p44 = por %p42, %p43
      %p45 = scmp.ne.s32.totalorder %s31, %s32
      %p46 = scmp.eq.s32.totalorder %s24, 1
      %p47 = por %p45, %p46
      %p49 = scmp.ne.s32.totalorder %s32, %s48
      %p50 = scmp.eq.s32.totalorder %s24, 0
      %p51 = por %p49, %p50
      %s53 = sadd.s32 %s52, 1
      %p56 = scmp.eq.s32.totalorder %s18, 1
      %p57 = scmp.ne.s32.totalorder %s52, %s54
      %p58 = scmp.eq.s32.totalorder %s18, 0
      %p59 = por %p57, %p58
      %p60 = scmp.ne.s32.totalorder %s52, %s54
      %p61 = scmp.eq.s32.totalorder %s23, 1
      %p62 = por %p60, %p61
      %p63 = scmp.ne.s32.totalorder %s54, %s55
      %p64 = scmp.eq.s32.totalorder %s23, 0
      %p65 = por %p63, %p64
      %p66 = scmp.ne.s32.totalorder %s54, %s55
      %p67 = scmp.eq.s32.totalorder %s24, 1
      %p68 = por %p66, %p67
      %p70 = scmp.ne.s32.totalorder %s55, %s69
      %p71 = scmp.eq.s32.totalorder %s24, 0
      %p72 = por %p70, %p71
      %s74 = sadd.s32 %s73, 1
      %p77 = scmp.eq.s32.totalorder %s18, 1
      %p78 = scmp.ne.s32.totalorder %s73, %s75
      %p79 = scmp.eq.s32.totalorder %s18, 0
      %p80 = por %p78, %p79
      %p81 = scmp.ne.s32.totalorder %s73, %s75
      %p82 = scmp.eq.s32.totalorder %s23, 1
      %p83 = por %p81, %p82
      %p84 = scmp.ne.s32.totalorder %s75, %s76
      %p85 = scmp.eq.s32.totalorder %s23, 0
      %p86 = por %p84, %p85
      %p87 = scmp.ne.s32.totalorder %s75, %s76
      %p88 = scmp.eq.s32.totalorder %s24, 1
      %p89 = por %p87, %p88
      %p91 = scmp.ne.s32.totalorder %s76, %s90
      %p92 = scmp.eq.s32.totalorder %s24, 0
      %p93 = por %p91, %p92
      %s95 = sadd.s32 %s94, 1
      %p98 = scmp.eq.s32.totalorder %s18, 1
      %p99 = scmp.ne.s32.totalorder %s94, %s96
      %p100 = scmp.eq.s32.totalorder %s18, 0
      %p101 = por %p99, %p100
      %p102 = scmp.ne.s32.totalorder %s94, %s96
      %p103 = scmp.eq.s32.totalorder %s23, 1
      %p104 = por %p102, %p103
      %p105 = scmp.ne.s32.totalorder %s96, %s97
      %p106 = scmp.eq.s32.totalorder %s23, 0
      %p107 = por %p105, %p106
      %p108 = scmp.ne.s32.totalorder %s96, %s97
      %p109 = scmp.eq.s32.totalorder %s24, 1
      %p110 = por %p108, %p109
      %p112 = scmp.ne.s32.totalorder %s97, %s111
      %p113 = scmp.eq.s32.totalorder %s24, 0
      %p114 = por %p112, %p113
      %s116 = sadd.s32 %s115, 1
      %p119 = scmp.eq.s32.totalorder %s18, 1
      %p120 = scmp.ne.s32.totalorder %s115, %s117
      %p121 = scmp.eq.s32.totalorder %s18, 0
      %p122 = por %p120, %p121
      %p123 = scmp.ne.s32.totalorder %s115, %s117
      %p124 = scmp.eq.s32.totalorder %s23, 1
      %p125 = por %p123, %p124
      %p126 = scmp.ne.s32.totalorder %s117, %s118
      %p127 = scmp.eq.s32.totalorder %s23, 0
      %p128 = por %p126, %p127
      %p129 = scmp.ne.s32.totalorder %s117, %s118
      %p130 = scmp.eq.s32.totalorder %s24, 1
      %p131 = por %p129, %p130
      %p133 = scmp.ne.s32.totalorder %s118, %s132
      %p134 = scmp.eq.s32.totalorder %s24, 0
      %p135 = por %p133, %p134
      %s136 = ssub.s32 %s18, %s25
      %p137 = scmp.eq.s32.totalorder %s136, 0
      %s139 = sadd.s32 %s138, 1
      %s140 = scalar_select %p137, %s138, %s139
      %p143 = pneg %p137
      %p144 = scmp.eq.s32.totalorder %s18, 1
      %p145 = por %p143, %p144
      %p146 = scmp.ne.s32.totalorder %s138, %s141
      %p147 = scmp.eq.s32.totalorder %s18, 0
      %p148 = por %p146, %p147
      %p149 = scmp.ne.s32.totalorder %s138, %s141
      %p150 = scmp.eq.s32.totalorder %s23, 1
      %p151 = por %p149, %p150
      %p152 = scmp.ne.s32.totalorder %s141, %s142
      %p153 = scmp.eq.s32.totalorder %s23, 0
      %p154 = por %p152, %p153
      %p155 = scmp.ne.s32.totalorder %s141, %s142
      %p156 = scmp.eq.s32.totalorder %s24, 1
      %p157 = por %p155, %p156
      %p159 = scmp.ne.s32.totalorder %s142, %s158
      %p160 = scmp.eq.s32.totalorder %s24, 0
      %p161 = por %p159, %p160
      %p162 = scmp.le.s32.totalorder 1, %s18
      %p163 = scmp.lt.s32.totalorder %s18, 3
      %p164 = pnand %p162, %p163
      %p165 = pneg %p164
      // Predicated region
      $region9: #{tpu_custom_call.1} parent=5 // pred_check
        _
      $region10: #{tpu_custom_call.1} parent=5 // pred_check_branch
        %167 = sbr.rel (%p164) target = $region12
      $region11: #{tpu_custom_call.1} parent=5 // pred_region
        %s168 = ssub.s32 %s18, 1
        // Predicated region
        $region13: #{tpu_custom_call.1} parent=11 // pred_check
          %p169 = pneg %p65
        $region14: #{tpu_custom_call.1} parent=11 // pred_check_branch
          %171 = sbr.rel (%p169) target = $region16
        $region15: #{tpu_custom_call.1} parent=11 // pred_region
          %s173 = ssub.s32 1024, 1024
          %174 = vsyncadd [#allocation6], %s173
          %s175 = sshll.u32 [#allocation5], 4
          %s176 = int_to_ptr.vmem [resolvable:$true] %s175
          %181 = dma.hbm_to_vmem [thread:$0]  %s1, 1024, %s176, [#allocation6], 64, 64, 4
        $region16: #{tpu_custom_call.1} parent=11 // pred_fallthru
          _
        // Predicated region
        $region17: #{tpu_custom_call.1} parent=11 // pred_check
          %p182 = pneg %p86
        $region18: #{tpu_custom_call.1} parent=11 // pred_check_branch
          %184 = sbr.rel (%p182) target = $region20
        $region19: #{tpu_custom_call.1} parent=11 // pred_region
          _
        $region20: #{tpu_custom_call.1} parent=11 // pred_fallthru
          _
        // Predicated region
        $region21: #{tpu_custom_call.1} parent=11 // pred_check
          %p185 = pneg %p107
        $region22: #{tpu_custom_call.1} parent=11 // pred_check_branch
          %187 = sbr.rel (%p185) target = $region24
        $region23: #{tpu_custom_call.1} parent=11 // pred_region
          %s189 = ssub.s32 1024, 1024
          %190 = vsyncadd [#allocation6], %s189
          %s191 = sshll.u32 [#allocation7], 4
          %s192 = int_to_ptr.vmem [resolvable:$true] %s191
          %197 = dma.hbm_to_vmem [thread:$0]  %s3, 1024, %s192, [#allocation6], 64, 64, 4
        $region24: #{tpu_custom_call.1} parent=11 // pred_fallthru
          _
        // Predicated region
        $region25: #{tpu_custom_call.1} parent=11 // pred_check
          %p198 = pneg %p128
        $region26: #{tpu_custom_call.1} parent=11 // pred_check_branch
          %200 = sbr.rel (%p198) target = $region28
        $region27: #{tpu_custom_call.1} parent=11 // pred_region
          _
        $region28: #{tpu_custom_call.1} parent=11 // pred_fallthru
          _
      $region12: #{tpu_custom_call.1} parent=5 // pred_fallthru
        _
      %p201 = scmp.lt.s32.totalorder %s18, 2
      // Predicated region
      $region29: #{tpu_custom_call.1} parent=5 // pred_check
        %p202 = pneg %p201
      $region30: #{tpu_custom_call.1} parent=5 // pred_check_branch
        %204 = sbr.rel (%p202) target = $region32
      $region31: #{tpu_custom_call.1} parent=5 // pred_region
        // Predicated region
        $region33: #{tpu_custom_call.1} parent=31 // pred_check
          %p205 = pneg %p38
        $region34: #{tpu_custom_call.1} parent=31 // pred_check_branch
          %207 = sbr.rel (%p205) target = $region36
        $region35: #{tpu_custom_call.1} parent=31 // pred_region
          %s208 = sand.u32 %s28, 1
          %s209 = scalar_lea.sflag [#allocation3], %s208
          %s210 = sand.u32 %s28, 1
          %s211 = smul.addr %s210, 64
          %s212 = scalar_lea.vmem [#allocation2], %s211
          %s213 = smul.u32 16, %s18
          %s215 = ssub.s32 1024, 1024
          %216 = vsyncadd %s209, %s215
          %s217 = smul.addr %s213, 64
          %s218 = scalar_lea.hbm %s0, %s217
          %s219 = sshll.u32 %s212, 4
          %s220 = int_to_ptr.vmem [resolvable:$true] %s219
          %225 = dma.hbm_to_vmem [thread:$0]  %s218, 1024, %s220, %s209, 64, 64, 4
        $region36: #{tpu_custom_call.1} parent=31 // pred_fallthru
          _
      $region32: #{tpu_custom_call.1} parent=5 // pred_fallthru
        _
      %p226 = scmp.le.s32.totalorder 1, %s18
      %p227 = scmp.lt.s32.totalorder %s18, 3
      %p228 = pnand %p226, %p227
      %p229 = pneg %p228
      // Predicated region
      $region37: #{tpu_custom_call.1} parent=5 // pred_check
        _
      $region38: #{tpu_custom_call.1} parent=5 // pred_check_branch
        %231 = sbr.rel (%p228) target = $region40
      $region39: #{tpu_custom_call.1} parent=5 // pred_region
        %s232 = ssub.s32 %s18, 1
        %s233 = sand.u32 %s31, 1
        %s234 = scalar_lea.sflag [#allocation3], %s233
        %s235 = sand.u32 %s31, 1
        %s236 = smul.addr %s235, 64
        %s237 = scalar_lea.vmem [#allocation2], %s236
        // Predicated region
        $region41: #{tpu_custom_call.1} parent=39 // pred_check
          %p238 = pneg %p44
        $region42: #{tpu_custom_call.1} parent=39 // pred_check_branch
          %240 = sbr.rel (%p238) target = $region44
        $region43: #{tpu_custom_call.1} parent=39 // pred_region
          %241 = dma.done %s234, 1024
        $region44: #{tpu_custom_call.1} parent=39 // pred_fallthru
          _
        // Predicated region
        $region45: #{tpu_custom_call.1} parent=39 // pred_check
          %p242 = pneg %p65
        $region46: #{tpu_custom_call.1} parent=39 // pred_check_branch
          %244 = sbr.rel (%p242) target = $region48
        $region47: #{tpu_custom_call.1} parent=39 // pred_region
          %245 = dma.done [#allocation6], 1024
        $region48: #{tpu_custom_call.1} parent=39 // pred_fallthru
          _
        // Predicated region
        $region49: #{tpu_custom_call.1} parent=39 // pred_check
          %p246 = pneg %p107
        $region50: #{tpu_custom_call.1} parent=39 // pred_check_branch
          %248 = sbr.rel (%p246) target = $region52
        $region51: #{tpu_custom_call.1} parent=39 // pred_region
          %249 = dma.done [#allocation6], 1024
        $region52: #{tpu_custom_call.1} parent=39 // pred_fallthru
          _
        %s250 = sand.u32 %s31, 1
        %s251 = scalar_lea.sflag [#allocation3], %s250
        %s252 = sand.u32 %s31, 1
        %s253 = smul.addr %s252, 64
        %s254 = scalar_lea.vmem [#allocation2], %s253
        %p255 = pneg %p44
        %p256 = pneg %p41
        %p257 = pneg %p65
        %p258 = pneg %p62
        %p259 = pneg %p86
        %p260 = pneg %p83
        %p261 = pneg %p107
        %p262 = pneg %p104
        %p263 = pneg %p128
        %p264 = pneg %p125
        %p265 = pneg %p154
        %p266 = pneg %p151
        %s267 = sand.u32 %s141, 1
        %s268 = scalar_lea.sflag [#allocation4], %s267
        %s269 = sand.u32 %s141, 1
        %s270 = smul.addr %s269, 64
        %s271 = scalar_lea.vmem [#allocation8], %s270
        %s272 = smul.u32 16, %s23
        %s273 = smul.u32 16, %s23
        %v275 = vld [vmem:[%s237] sm:$0xf]
        %v276 = vld [vmem:[%s237 + $0x4] sm:$0xf]
        %v277 = vld [vmem:[%s237 + $0x8] sm:$0xf]
        %v278 = vld [vmem:[%s237 + $0xc] sm:$0xf]
        %v279 = vld [vmem:[%s237 + $0x10] sm:$0xf]
        %v280 = vld [vmem:[%s237 + $0x14] sm:$0xf]
        %v281 = vld [vmem:[%s237 + $0x18] sm:$0xf]
        %v282 = vld [vmem:[%s237 + $0x1c] sm:$0xf]
        %v283 = vld [vmem:[%s237 + $0x20] sm:$0xf]
        %v284 = vld [vmem:[%s237 + $0x24] sm:$0xf]
        %v285 = vld [vmem:[%s237 + $0x28] sm:$0xf]
        %v286 = vld [vmem:[%s237 + $0x2c] sm:$0xf]
        %v287 = vld [vmem:[%s237 + $0x30] sm:$0xf]
        %v288 = vld [vmem:[%s237 + $0x34] sm:$0xf]
        %v289 = vld [vmem:[%s237 + $0x38] sm:$0xf]
        %v290 = vld [vmem:[%s237 + $0x3c] sm:$0xf]
        %v291 = vld [vmem:[#allocation5] sm:$0xf]
        %v292 = vld [vmem:[#allocation5 + $0x4] sm:$0xf]
        %v293 = vld [vmem:[#allocation5 + $0x8] sm:$0xf]
        %v294 = vld [vmem:[#allocation5 + $0xc] sm:$0xf]
        %v295 = vld [vmem:[#allocation5 + $0x10] sm:$0xf]
        %v296 = vld [vmem:[#allocation5 + $0x14] sm:$0xf]
        %v297 = vld [vmem:[#allocation5 + $0x18] sm:$0xf]
        %v298 = vld [vmem:[#allocation5 + $0x1c] sm:$0xf]
        %v299 = vld [vmem:[#allocation5 + $0x20] sm:$0xf]
        %v300 = vld [vmem:[#allocation5 + $0x24] sm:$0xf]
        %v301 = vld [vmem:[#allocation5 + $0x28] sm:$0xf]
        %v302 = vld [vmem:[#allocation5 + $0x2c] sm:$0xf]
        %v303 = vld [vmem:[#allocation5 + $0x30] sm:$0xf]
        %v304 = vld [vmem:[#allocation5 + $0x34] sm:$0xf]
        %v305 = vld [vmem:[#allocation5 + $0x38] sm:$0xf]
        %v306 = vld [vmem:[#allocation5 + $0x3c] sm:$0xf]
        %v307 = vld [vmem:[%s2] sm:$0x1]
        %v309 = vlaneseq
        %v310 = vshrl.u32 %v309, 7
        %v311 = vsub.s32 0, %v310
        %v312 = vrot.slane %v307, %v311
        %v330 = vunpack.c.l.b16 %v275
        %v331 = vunpack.c.l.b16 %v276
        %v332 = vunpack.c.l.b16 %v277
        %v333 = vunpack.c.l.b16 %v278
        %v334 = vunpack.c.l.b16 %v279
        %v335 = vunpack.c.l.b16 %v280
        %v336 = vunpack.c.l.b16 %v281
        %v337 = vunpack.c.l.b16 %v282
        %v338 = vunpack.c.l.b16 %v283
        %v339 = vunpack.c.l.b16 %v284
        %v340 = vunpack.c.l.b16 %v285
        %v341 = vunpack.c.l.b16 %v286
        %v342 = vunpack.c.l.b16 %v287
        %v343 = vunpack.c.l.b16 %v288
        %v344 = vunpack.c.l.b16 %v289
        %v345 = vunpack.c.l.b16 %v290
        %v346 = vpack.c.b16 %v331, %v330
        %v347 = vpack.c.b16 %v333, %v332
        %v348 = vpack.c.b16 %v335, %v334
        %v349 = vpack.c.b16 %v337, %v336
        %v350 = vpack.c.b16 %v339, %v338
        %v351 = vpack.c.b16 %v341, %v340
        %v352 = vpack.c.b16 %v343, %v342
        %v353 = vpack.c.b16 %v345, %v344
        %v378 = vunpack.c.l.b16 %v291
        %v379 = vunpack.c.l.b16 %v292
        %v380 = vunpack.c.l.b16 %v293
        %v381 = vunpack.c.l.b16 %v294
        %v382 = vunpack.c.l.b16 %v295
        %v383 = vunpack.c.l.b16 %v296
        %v384 = vunpack.c.l.b16 %v297
        %v385 = vunpack.c.l.b16 %v298
        %v386 = vunpack.c.l.b16 %v299
        %v387 = vunpack.c.l.b16 %v300
        %v388 = vunpack.c.l.b16 %v301
        %v389 = vunpack.c.l.b16 %v302
        %v390 = vunpack.c.l.b16 %v303
        %v391 = vunpack.c.l.b16 %v304
        %v392 = vunpack.c.l.b16 %v305
        %v393 = vunpack.c.l.b16 %v306
        %v394 = vpack.c.b16 %v379, %v378
        %v395 = vpack.c.b16 %v381, %v380
        %v396 = vpack.c.b16 %v383, %v382
        %v397 = vpack.c.b16 %v385, %v384
        %v398 = vpack.c.b16 %v387, %v386
        %v399 = vpack.c.b16 %v389, %v388
        %v400 = vpack.c.b16 %v391, %v390
        %v401 = vpack.c.b16 %v393, %v392
        %410 = vmatprep.subr.bf16.mxu0 0
        %411 = vmatpush1.bf16.msra.mxu0 %v394
        %412 = vmatprep.subr.bf16.mxu0 0
        %413 = vmatpush1.bf16.msra.mxu0 %v395
        %414 = vmatprep.subr.bf16.mxu0 0
        %415 = vmatpush1.bf16.msra.mxu0 %v396
        %416 = vmatprep.subr.bf16.mxu0 0
        %417 = vmatpush1.bf16.msra.mxu0 %v397
        %418 = vmatprep.subr.bf16.mxu0 0
        %419 = vmatpush1.bf16.msra.mxu0 %v398
        %420 = vmatprep.subr.bf16.mxu0 0
        %421 = vmatpush1.bf16.msra.mxu0 %v399
        %422 = vmatprep.subr.bf16.mxu0 0
        %423 = vmatpush1.bf16.msra.mxu0 %v400
        %424 = vmatprep.subr.bf16.mxu0 0
        %425 = vmatpush1.bf16.msra.mxu0 %v401
        %426 = vmatprep.subr.bf16.mxu0 0
        %427 = vmatpush1.bf16.msra.mxu0 0
        %428 = vmatprep.subr.bf16.mxu0 0
        %429 = vmatpush1.bf16.msra.mxu0 0
        %430 = vmatprep.subr.bf16.mxu0 0
        %431 = vmatpush1.bf16.msra.mxu0 0
        %432 = vmatprep.subr.bf16.mxu0 0
        %433 = vmatpush1.bf16.msra.mxu0 0
        %434 = vmatprep.subr.bf16.mxu0 0
        %435 = vmatpush1.bf16.msra.mxu0 0
        %436 = vmatprep.subr.bf16.mxu0 0
        %437 = vmatpush1.bf16.msra.mxu0 0
        %438 = vmatprep.subr.bf16.mxu0 0
        %439 = vmatpush1.bf16.msra.mxu0 0
        %440 = vmatprep.subr.bf16.mxu0 0
        %441 = vmatpush1.bf16.msra.mxu0 0
        %442 = vmatprep.mubr.bf16.mxu0 0
        %443 = vmatmul.mubr.bf16.gmra.mrb[0].mxu0 %v346
        %v444 = vpop.f32.mrb[0].mxu0
        %v445 = vadd.f32 %v312, %v444
        %v446 = vpop.f32.mrb[0].mxu0
        %v447 = vpop.f32.mrb[0].mxu0
        %v448 = vadd.f32 %v312, %v447
        %v449 = vpop.f32.mrb[0].mxu0
        %450 = vmatprep.mubr.bf16.mxu0 0
        %451 = vmatmul.mubr.bf16.gmra.mrb[0].mxu0 %v347
        %v452 = vpop.f32.mrb[0].mxu0
        %v453 = vadd.f32 %v312, %v452
        %v454 = vpop.f32.mrb[0].mxu0
        %v455 = vpop.f32.mrb[0].mxu0
        %v456 = vadd.f32 %v312, %v455
        %v457 = vpop.f32.mrb[0].mxu0
        %458 = vmatprep.mubr.bf16.mxu0 0
        %459 = vmatmul.mubr.bf16.gmra.mrb[0].mxu0 %v348
        %v460 = vpop.f32.mrb[0].mxu0
        %v461 = vadd.f32 %v312, %v460
        %v462 = vpop.f32.mrb[0].mxu0
        %v463 = vpop.f32.mrb[0].mxu0
        %v464 = vadd.f32 %v312, %v463
        %v465 = vpop.f32.mrb[0].mxu0
        %466 = vmatprep.mubr.bf16.mxu0 0
        %467 = vmatmul.mubr.bf16.gmra.mrb[0].mxu0 %v349
        %v468 = vpop.f32.mrb[0].mxu0
        %v469 = vadd.f32 %v312, %v468
        %v470 = vpop.f32.mrb[0].mxu0
        %v471 = vpop.f32.mrb[0].mxu0
        %v472 = vadd.f32 %v312, %v471
        %v473 = vpop.f32.mrb[0].mxu0
        %474 = vmatprep.mubr.bf16.mxu0 0
        %475 = vmatmul.mubr.bf16.gmra.mrb[0].mxu0 %v350
        %v476 = vpop.f32.mrb[0].mxu0
        %v477 = vadd.f32 %v312, %v476
        %v478 = vpop.f32.mrb[0].mxu0
        %v479 = vpop.f32.mrb[0].mxu0
        %v480 = vadd.f32 %v312, %v479
        %v481 = vpop.f32.mrb[0].mxu0
        %482 = vmatprep.mubr.bf16.mxu0 0
        %483 = vmatmul.mubr.bf16.gmra.mrb[0].mxu0 %v351
        %v484 = vpop.f32.mrb[0].mxu0
        %v485 = vadd.f32 %v312, %v484
        %v486 = vpop.f32.mrb[0].mxu0
        %v487 = vpop.f32.mrb[0].mxu0
        %v488 = vadd.f32 %v312, %v487
        %v489 = vpop.f32.mrb[0].mxu0
        %490 = vmatprep.mubr.bf16.mxu0 0
        %491 = vmatmul.mubr.bf16.gmra.mrb[0].mxu0 %v352
        %v492 = vpop.f32.mrb[0].mxu0
        %v493 = vadd.f32 %v312, %v492
        %v494 = vpop.f32.mrb[0].mxu0
        %v495 = vpop.f32.mrb[0].mxu0
        %v496 = vadd.f32 %v312, %v495
        %v497 = vpop.f32.mrb[0].mxu0
        %498 = vmatprep.mubr.bf16.mxu0 0
        %499 = vmatmul.mubr.bf16.gmra.mrb[0].mxu0 %v353
        %v500 = vpop.f32.mrb[0].mxu0
        %v501 = vadd.f32 %v312, %v500
        %v502 = vpop.f32.mrb[0].mxu0
        %v503 = vpop.f32.mrb[0].mxu0
        %v504 = vadd.f32 %v312, %v503
        %v505 = vpop.f32.mrb[0].mxu0
        %506 = vdwg.mxu0
        %v507 = vmul.f32 %v445, 0.01
        %v508 = vmul.f32 %v448, 0.01
        %v509 = vmul.f32 %v453, 0.01
        %v510 = vmul.f32 %v456, 0.01
        %v511 = vmul.f32 %v461, 0.01
        %v512 = vmul.f32 %v464, 0.01
        %v513 = vmul.f32 %v469, 0.01
        %v514 = vmul.f32 %v472, 0.01
        %v515 = vmul.f32 %v477, 0.01
        %v516 = vmul.f32 %v480, 0.01
        %v517 = vmul.f32 %v485, 0.01
        %v518 = vmul.f32 %v488, 0.01
        %v519 = vmul.f32 %v493, 0.01
        %v520 = vmul.f32 %v496, 0.01
        %v521 = vmul.f32 %v501, 0.01
        %v522 = vmul.f32 %v504, 0.01
        %v523 = vmax.f32 %v445, %v507
        %v524 = vmax.f32 %v448, %v508
        %v525 = vmax.f32 %v453, %v509
        %v526 = vmax.f32 %v456, %v510
        %v527 = vmax.f32 %v461, %v511
        %v528 = vmax.f32 %v464, %v512
        %v529 = vmax.f32 %v469, %v513
        %v530 = vmax.f32 %v472, %v514
        %v531 = vmax.f32 %v477, %v515
        %v532 = vmax.f32 %v480, %v516
        %v533 = vmax.f32 %v485, %v517
        %v534 = vmax.f32 %v488, %v518
        %v535 = vmax.f32 %v493, %v519
        %v536 = vmax.f32 %v496, %v520
        %v537 = vmax.f32 %v501, %v521
        %v538 = vmax.f32 %v504, %v522
        %v539 = vpack.c.bf16 %v524, %v523
        %v540 = vpack.c.bf16 %v526, %v525
        %v541 = vpack.c.bf16 %v528, %v527
        %v542 = vpack.c.bf16 %v530, %v529
        %v543 = vpack.c.bf16 %v532, %v531
        %v544 = vpack.c.bf16 %v534, %v533
        %v545 = vpack.c.bf16 %v536, %v535
        %v546 = vpack.c.bf16 %v538, %v537
        %v547 = vld [vmem:[#allocation7] sm:$0xf]
        %v548 = vld [vmem:[#allocation7 + $0x4] sm:$0xf]
        %v549 = vld [vmem:[#allocation7 + $0x8] sm:$0xf]
        %v550 = vld [vmem:[#allocation7 + $0xc] sm:$0xf]
        %v551 = vld [vmem:[#allocation7 + $0x10] sm:$0xf]
        %v552 = vld [vmem:[#allocation7 + $0x14] sm:$0xf]
        %v553 = vld [vmem:[#allocation7 + $0x18] sm:$0xf]
        %v554 = vld [vmem:[#allocation7 + $0x1c] sm:$0xf]
        %v555 = vld [vmem:[#allocation7 + $0x20] sm:$0xf]
        %v556 = vld [vmem:[#allocation7 + $0x24] sm:$0xf]
        %v557 = vld [vmem:[#allocation7 + $0x28] sm:$0xf]
        %v558 = vld [vmem:[#allocation7 + $0x2c] sm:$0xf]
        %v559 = vld [vmem:[#allocation7 + $0x30] sm:$0xf]
        %v560 = vld [vmem:[#allocation7 + $0x34] sm:$0xf]
        %v561 = vld [vmem:[#allocation7 + $0x38] sm:$0xf]
        %v562 = vld [vmem:[#allocation7 + $0x3c] sm:$0xf]
        %v563 = vld [vmem:[%s4] sm:$0x1]
        %v565 = vlaneseq
        %v566 = vshrl.u32 %v565, 7
        %v567 = vsub.s32 0, %v566
        %v568 = vrot.slane %v563, %v567
        %v586 = vunpack.c.l.b16 %v547
        %v587 = vunpack.c.l.b16 %v548
        %v588 = vunpack.c.l.b16 %v549
        %v589 = vunpack.c.l.b16 %v550
        %v590 = vunpack.c.l.b16 %v551
        %v591 = vunpack.c.l.b16 %v552
        %v592 = vunpack.c.l.b16 %v553
        %v593 = vunpack.c.l.b16 %v554
        %v594 = vunpack.c.l.b16 %v555
        %v595 = vunpack.c.l.b16 %v556
        %v596 = vunpack.c.l.b16 %v557
        %v597 = vunpack.c.l.b16 %v558
        %v598 = vunpack.c.l.b16 %v559
        %v599 = vunpack.c.l.b16 %v560
        %v600 = vunpack.c.l.b16 %v561
        %v601 = vunpack.c.l.b16 %v562
        %v602 = vpack.c.b16 %v587, %v586
        %v603 = vpack.c.b16 %v589, %v588
        %v604 = vpack.c.b16 %v591, %v590
        %v605 = vpack.c.b16 %v593, %v592
        %v606 = vpack.c.b16 %v595, %v594
        %v607 = vpack.c.b16 %v597, %v596
        %v608 = vpack.c.b16 %v599, %v598
        %v609 = vpack.c.b16 %v601, %v600
        %618 = vmatprep.subr.bf16.mxu0 0
        %619 = vmatpush1.bf16.msra.mxu0 %v602
        %620 = vmatprep.subr.bf16.mxu0 0
        %621 = vmatpush1.bf16.msra.mxu0 %v603
        %622 = vmatprep.subr.bf16.mxu0 0
        %623 = vmatpush1.bf16.msra.mxu0 %v604
        %624 = vmatprep.subr.bf16.mxu0 0
        %625 = vmatpush1.bf16.msra.mxu0 %v605
        %626 = vmatprep.subr.bf16.mxu0 0
        %627 = vmatpush1.bf16.msra.mxu0 %v606
        %628 = vmatprep.subr.bf16.mxu0 0
        %629 = vmatpush1.bf16.msra.mxu0 %v607
        %630 = vmatprep.subr.bf16.mxu0 0
        %631 = vmatpush1.bf16.msra.mxu0 %v608
        %632 = vmatprep.subr.bf16.mxu0 0
        %633 = vmatpush1.bf16.msra.mxu0 %v609
        %634 = vmatprep.subr.bf16.mxu0 0
        %635 = vmatpush1.bf16.msra.mxu0 0
        %636 = vmatprep.subr.bf16.mxu0 0
        %637 = vmatpush1.bf16.msra.mxu0 0
        %638 = vmatprep.subr.bf16.mxu0 0
        %639 = vmatpush1.bf16.msra.mxu0 0
        %640 = vmatprep.subr.bf16.mxu0 0
        %641 = vmatpush1.bf16.msra.mxu0 0
        %642 = vmatprep.subr.bf16.mxu0 0
        %643 = vmatpush1.bf16.msra.mxu0 0
        %644 = vmatprep.subr.bf16.mxu0 0
        %645 = vmatpush1.bf16.msra.mxu0 0
        %646 = vmatprep.subr.bf16.mxu0 0
        %647 = vmatpush1.bf16.msra.mxu0 0
        %648 = vmatprep.subr.bf16.mxu0 0
        %649 = vmatpush1.bf16.msra.mxu0 0
        %650 = vmatprep.mubr.bf16.mxu0 0
        %651 = vmatmul.mubr.bf16.gmra.mrb[0].mxu0 %v539
        %v652 = vpop.f32.mrb[0].mxu0
        %v653 = vadd.f32 %v568, %v652
        %v654 = vpop.f32.mrb[0].mxu0
        %v655 = vpop.f32.mrb[0].mxu0
        %v656 = vadd.f32 %v568, %v655
        %v657 = vpop.f32.mrb[0].mxu0
        %658 = vmatprep.mubr.bf16.mxu0 0
        %659 = vmatmul.mubr.bf16.gmra.mrb[0].mxu0 %v540
        %v660 = vpop.f32.mrb[0].mxu0
        %v661 = vadd.f32 %v568, %v660
        %v662 = vpop.f32.mrb[0].mxu0
        %v663 = vpop.f32.mrb[0].mxu0
        %v664 = vadd.f32 %v568, %v663
        %v665 = vpop.f32.mrb[0].mxu0
        %666 = vmatprep.mubr.bf16.mxu0 0
        %667 = vmatmul.mubr.bf16.gmra.mrb[0].mxu0 %v541
        %v668 = vpop.f32.mrb[0].mxu0
        %v669 = vadd.f32 %v568, %v668
        %v670 = vpop.f32.mrb[0].mxu0
        %v671 = vpop.f32.mrb[0].mxu0
        %v672 = vadd.f32 %v568, %v671
        %v673 = vpop.f32.mrb[0].mxu0
        %674 = vmatprep.mubr.bf16.mxu0 0
        %675 = vmatmul.mubr.bf16.gmra.mrb[0].mxu0 %v542
        %v676 = vpop.f32.mrb[0].mxu0
        %v677 = vadd.f32 %v568, %v676
        %v678 = vpop.f32.mrb[0].mxu0
        %v679 = vpop.f32.mrb[0].mxu0
        %v680 = vadd.f32 %v568, %v679
        %v681 = vpop.f32.mrb[0].mxu0
        %682 = vmatprep.mubr.bf16.mxu0 0
        %683 = vmatmul.mubr.bf16.gmra.mrb[0].mxu0 %v543
        %v684 = vpop.f32.mrb[0].mxu0
        %v685 = vadd.f32 %v568, %v684
        %v686 = vpop.f32.mrb[0].mxu0
        %v687 = vpop.f32.mrb[0].mxu0
        %v688 = vadd.f32 %v568, %v687
        %v689 = vpop.f32.mrb[0].mxu0
        %690 = vmatprep.mubr.bf16.mxu0 0
        %691 = vmatmul.mubr.bf16.gmra.mrb[0].mxu0 %v544
        %v692 = vpop.f32.mrb[0].mxu0
        %v693 = vadd.f32 %v568, %v692
        %v694 = vpop.f32.mrb[0].mxu0
        %v695 = vpop.f32.mrb[0].mxu0
        %v696 = vadd.f32 %v568, %v695
        %v697 = vpop.f32.mrb[0].mxu0
        %698 = vmatprep.mubr.bf16.mxu0 0
        %699 = vmatmul.mubr.bf16.gmra.mrb[0].mxu0 %v545
        %v700 = vpop.f32.mrb[0].mxu0
        %v701 = vadd.f32 %v568, %v700
        %v702 = vpop.f32.mrb[0].mxu0
        %v703 = vpop.f32.mrb[0].mxu0
        %v704 = vadd.f32 %v568, %v703
        %v705 = vpop.f32.mrb[0].mxu0
        %706 = vmatprep.mubr.bf16.mxu0 0
        %707 = vmatmul.mubr.bf16.gmra.mrb[0].mxu0 %v546
        %v708 = vpop.f32.mrb[0].mxu0
        %v709 = vadd.f32 %v568, %v708
        %v710 = vpop.f32.mrb[0].mxu0
        %v711 = vpop.f32.mrb[0].mxu0
        %v712 = vadd.f32 %v568, %v711
        %v713 = vpop.f32.mrb[0].mxu0
        %714 = vdwg.mxu0
        %v715 = vmul.f32 %v653, %v653
        %v716 = vmul.f32 %v656, %v656
        %v717 = vmul.f32 %v661, %v661
        %v718 = vmul.f32 %v664, %v664
        %v719 = vmul.f32 %v669, %v669
        %v720 = vmul.f32 %v672, %v672
        %v721 = vmul.f32 %v677, %v677
        %v722 = vmul.f32 %v680, %v680
        %v723 = vmul.f32 %v685, %v685
        %v724 = vmul.f32 %v688, %v688
        %v725 = vmul.f32 %v693, %v693
        %v726 = vmul.f32 %v696, %v696
        %v727 = vmul.f32 %v701, %v701
        %v728 = vmul.f32 %v704, %v704
        %v729 = vmul.f32 %v709, %v709
        %v730 = vmul.f32 %v712, %v712
        %731 = vadd.xlane.f32.xlu0 %v715
        %v732 = vpop.xlane.xlu0 %731
        %733 = vadd.xlane.f32.xlu0 %v716
        %v734 = vpop.xlane.xlu0 %733
        %735 = vadd.xlane.f32.xlu0 %v717
        %v736 = vpop.xlane.xlu0 %735
        %737 = vadd.xlane.f32.xlu0 %v718
        %v738 = vpop.xlane.xlu0 %737
        %739 = vadd.xlane.f32.xlu0 %v719
        %v740 = vpop.xlane.xlu0 %739
        %741 = vadd.xlane.f32.xlu0 %v720
        %v742 = vpop.xlane.xlu0 %741
        %743 = vadd.xlane.f32.xlu0 %v721
        %v744 = vpop.xlane.xlu0 %743
        %745 = vadd.xlane.f32.xlu0 %v722
        %v746 = vpop.xlane.xlu0 %745
        %747 = vadd.xlane.f32.xlu0 %v723
        %v748 = vpop.xlane.xlu0 %747
        %749 = vadd.xlane.f32.xlu0 %v724
        %v750 = vpop.xlane.xlu0 %749
        %751 = vadd.xlane.f32.xlu0 %v725
        %v752 = vpop.xlane.xlu0 %751
        %753 = vadd.xlane.f32.xlu0 %v726
        %v754 = vpop.xlane.xlu0 %753
        %755 = vadd.xlane.f32.xlu0 %v727
        %v756 = vpop.xlane.xlu0 %755
        %757 = vadd.xlane.f32.xlu0 %v728
        %v758 = vpop.xlane.xlu0 %757
        %759 = vadd.xlane.f32.xlu0 %v729
        %v760 = vpop.xlane.xlu0 %759
        %761 = vadd.xlane.f32.xlu0 %v730
        %v762 = vpop.xlane.xlu0 %761
        %v763 = vmax.f32 %v732, 1e-24
        %v764 = vmax.f32 %v734, 1e-24
        %v765 = vmax.f32 %v736, 1e-24
        %v766 = vmax.f32 %v738, 1e-24
        %v767 = vmax.f32 %v740, 1e-24
        %v768 = vmax.f32 %v742, 1e-24
        %v769 = vmax.f32 %v744, 1e-24
        %v770 = vmax.f32 %v746, 1e-24
        %v771 = vmax.f32 %v748, 1e-24
        %v772 = vmax.f32 %v750, 1e-24
        %v773 = vmax.f32 %v752, 1e-24
        %v774 = vmax.f32 %v754, 1e-24
        %v775 = vmax.f32 %v756, 1e-24
        %v776 = vmax.f32 %v758, 1e-24
        %v777 = vmax.f32 %v760, 1e-24
        %v778 = vmax.f32 %v762, 1e-24
        %v779 = vrsqrt.pop %v763
        %v780 = vrsqrt.pop %v764
        %v781 = vrsqrt.pop %v765
        %v782 = vrsqrt.pop %v766
        %v783 = vrsqrt.pop %v767
        %v784 = vrsqrt.pop %v768
        %v785 = vrsqrt.pop %v769
        %v786 = vrsqrt.pop %v770
        %v787 = vrsqrt.pop %v771
        %v788 = vrsqrt.pop %v772
        %v789 = vrsqrt.pop %v773
        %v790 = vrsqrt.pop %v774
        %v791 = vrsqrt.pop %v775
        %v792 = vrsqrt.pop %v776
        %v793 = vrsqrt.pop %v777
        %v794 = vrsqrt.pop %v778
        %v795 = vmul.f32 %v653, %v779
        %v796 = vmul.f32 %v656, %v780
        %v797 = vmul.f32 %v661, %v781
        %v798 = vmul.f32 %v664, %v782
        %v799 = vmul.f32 %v669, %v783
        %v800 = vmul.f32 %v672, %v784
        %v801 = vmul.f32 %v677, %v785
        %v802 = vmul.f32 %v680, %v786
        %v803 = vmul.f32 %v685, %v787
        %v804 = vmul.f32 %v688, %v788
        %v805 = vmul.f32 %v693, %v789
        %v806 = vmul.f32 %v696, %v790
        %v807 = vmul.f32 %v701, %v791
        %v808 = vmul.f32 %v704, %v792
        %v809 = vmul.f32 %v709, %v793
        %v810 = vmul.f32 %v712, %v794
        %v811 = vpack.c.bf16 %v796, %v795
        %v812 = vpack.c.bf16 %v798, %v797
        %v813 = vpack.c.bf16 %v800, %v799
        %v814 = vpack.c.bf16 %v802, %v801
        %v815 = vpack.c.bf16 %v804, %v803
        %v816 = vpack.c.bf16 %v806, %v805
        %v817 = vpack.c.bf16 %v808, %v807
        %v818 = vpack.c.bf16 %v810, %v809
        %v827 = vunpack.c.l.b16 %v811
        %v828 = vunpack.c.h.b16 %v811
        %v829 = vunpack.c.l.b16 %v812
        %v830 = vunpack.c.h.b16 %v812
        %v831 = vunpack.c.l.b16 %v813
        %v832 = vunpack.c.h.b16 %v813
        %v833 = vunpack.c.l.b16 %v814
        %v834 = vunpack.c.h.b16 %v814
        %v835 = vunpack.c.l.b16 %v815
        %v836 = vunpack.c.h.b16 %v815
        %v837 = vunpack.c.l.b16 %v816
        %v838 = vunpack.c.h.b16 %v816
        %v839 = vunpack.c.l.b16 %v817
        %v840 = vunpack.c.h.b16 %v817
        %v841 = vunpack.c.l.b16 %v818
        %v842 = vunpack.c.h.b16 %v818
        %v843 = vpack.c.b16 %v827, %v827
        %v844 = vpack.c.b16 %v828, %v828
        %v845 = vpack.c.b16 %v829, %v829
        %v846 = vpack.c.b16 %v830, %v830
        %v847 = vpack.c.b16 %v831, %v831
        %v848 = vpack.c.b16 %v832, %v832
        %v849 = vpack.c.b16 %v833, %v833
        %v850 = vpack.c.b16 %v834, %v834
        %v851 = vpack.c.b16 %v835, %v835
        %v852 = vpack.c.b16 %v836, %v836
        %v853 = vpack.c.b16 %v837, %v837
        %v854 = vpack.c.b16 %v838, %v838
        %v855 = vpack.c.b16 %v839, %v839
        %v856 = vpack.c.b16 %v840, %v840
        %v857 = vpack.c.b16 %v841, %v841
        %v858 = vpack.c.b16 %v842, %v842
        %875 = vst [vmem:[%s271] sm:$0xf] %v843
        %876 = vst [vmem:[%s271 + $0x4] sm:$0xf] %v844
        %877 = vst [vmem:[%s271 + $0x8] sm:$0xf] %v845
        %878 = vst [vmem:[%s271 + $0xc] sm:$0xf] %v846
        %879 = vst [vmem:[%s271 + $0x10] sm:$0xf] %v847
        %880 = vst [vmem:[%s271 + $0x14] sm:$0xf] %v848
        %881 = vst [vmem:[%s271 + $0x18] sm:$0xf] %v849
        %882 = vst [vmem:[%s271 + $0x1c] sm:$0xf] %v850
        %883 = vst [vmem:[%s271 + $0x20] sm:$0xf] %v851
        %884 = vst [vmem:[%s271 + $0x24] sm:$0xf] %v852
        %885 = vst [vmem:[%s271 + $0x28] sm:$0xf] %v853
        %886 = vst [vmem:[%s271 + $0x2c] sm:$0xf] %v854
        %887 = vst [vmem:[%s271 + $0x30] sm:$0xf] %v855
        %888 = vst [vmem:[%s271 + $0x34] sm:$0xf] %v856
        %889 = vst [vmem:[%s271 + $0x38] sm:$0xf] %v857
        %890 = vst [vmem:[%s271 + $0x3c] sm:$0xf] %v858
        %s891 = sand.u32 %s141, 1
        %s892 = scalar_lea.sflag [#allocation4], %s891
        %s893 = sand.u32 %s141, 1
        %s894 = smul.addr %s893, 64
        %s895 = scalar_lea.vmem [#allocation8], %s894
        // Predicated region
        $region53: #{tpu_custom_call.1} parent=39 // pred_check
          %p896 = pneg %p151
        $region54: #{tpu_custom_call.1} parent=39 // pred_check_branch
          %898 = sbr.rel (%p896) target = $region56
        $region55: #{tpu_custom_call.1} parent=39 // pred_region
          %s899 = smul.u32 16, %s23
          %s901 = ssub.s32 1024, 1024
          %902 = vsyncadd %s892, %s901
          %s903 = smul.addr %s899, 64
          %s904 = scalar_lea.hbm %s5, %s903
          %s905 = sshll.u32 %s895, 4
          %s906 = int_to_ptr.vmem [resolvable:$true] %s905
          %911 = dma.vmem_to_hbm [thread:$0]  %s906, 1024, %s904, %s892, 64, 64, 4
        $region56: #{tpu_custom_call.1} parent=39 // pred_fallthru
          _
      $region40: #{tpu_custom_call.1} parent=5 // pred_fallthru
        _
      %p912 = scmp.le.s32.totalorder 2, %s18
      // Predicated region
      $region57: #{tpu_custom_call.1} parent=5 // pred_check
        %p913 = pneg %p912
      $region58: #{tpu_custom_call.1} parent=5 // pred_check_branch
        %915 = sbr.rel (%p913) target = $region60
      $region59: #{tpu_custom_call.1} parent=5 // pred_region
        %s916 = ssub.s32 %s18, 2
        // Predicated region
        $region61: #{tpu_custom_call.1} parent=59 // pred_check
          %p917 = pneg %p157
        $region62: #{tpu_custom_call.1} parent=59 // pred_check_branch
          %919 = sbr.rel (%p917) target = $region64
        $region63: #{tpu_custom_call.1} parent=59 // pred_region
          %s920 = sand.u32 %s142, 1
          %s921 = scalar_lea.sflag [#allocation4], %s920
          %s922 = sand.u32 %s142, 1
          %s923 = smul.addr %s922, 64
          %s924 = scalar_lea.vmem [#allocation8], %s923
          %925 = dma.done %s921, 1024
        $region64: #{tpu_custom_call.1} parent=59 // pred_fallthru
          _
      $region60: #{tpu_custom_call.1} parent=5 // pred_fallthru
        _
    $region6: #{tpu_custom_call.1} parent=1 // loop_footer
      %s22 = sadd.s32 1, %s18
    $region7: #{tpu_custom_call.1} parent=1 // loop_footer_branch
      %17 = sbr.rel target = $region3
    $region8: #{tpu_custom_call.1} parent=1 // loop_exit
      _
    %926 = vsyncpa [#allocation3], 1
    %s927 = scalar_lea.sflag [#allocation3], 1
    %928 = vsyncpa %s927, 1
    %929 = vsyncpa [#allocation6], 1
    %930 = vsyncpa [#allocation4], 1
    %s931 = scalar_lea.sflag [#allocation4], 1
    %932 = vsyncpa %s931, 1

</llo_original>
